<compile_context>
chip_gen: v6e
topology: v6e:2x2x1
jax: 0.10.0
libtpu: 0.0.40
codegen_flags: <defaults>
</compile_context>

<pallas_src>
import math
import functools

import jax
import jax.numpy as jnp
from jax import lax
from jax.experimental import pallas as pl
from jax.experimental.pallas import tpu as pltpu


# ----------------------------- Pallas kernel --------------------------------

def attention_pooling_kernel(
    lat_ref,            # (Bb, N, D)   latents block, (B,N,D) layout
    pos_ref,            # (N, D)       reversed positional encoding slice
    query_ref,          # (Q, D)       learned query parameter (f32)
    lg_ref, lb_ref,     # (1, D)       latents LayerNorm gamma / beta
    qg_ref, qb_ref,     # (1, D)       query   LayerNorm gamma / beta
    wqkv_ref,           # (D, 3D)      fused [W_q | W_k | W_v]  (bf16)
    bqkv_ref,           # (1, 3D)      fused [b_q | b_k | b_v]  (f32)
    wo_ref, bo_ref,     # (1, D), (1, 1)  W_o row + bias (VPU output proj)
    logits_ref,         # (Bb, Q, 1)   output
    attnw_ref,          # (Bb, H, Q, N) output
    *, num_heads: int, d_model: int, batch_block: int, seq_len: int,
):
    D, H, Bb, N = d_model, num_heads, batch_block, seq_len
    Dh = D // H
    Q = query_ref.shape[0]
    f32 = jnp.float32
    scale = f32(math.sqrt(D))
    eps = f32(1e-5)
    mxdt = wqkv_ref.dtype          # bf16 (default) -> single-pass MXU operands

    # ---- latents branch: *sqrt(D) + reversed PE + (eval) dropout + LayerNorm ----
    x = lat_ref[...].astype(f32) * scale + pos_ref[...].astype(f32)        # (Bb, N, D)
    mu = jnp.mean(x, axis=-1, keepdims=True)
    xc = x - mu
    var = jnp.mean(xc * xc, axis=-1, keepdims=True)
    lat = xc * lax.rsqrt(var + eps) * lg_ref[...] + lb_ref[...]            # (Bb, N, D)
    lat2 = lat.reshape(Bb * N, D)                                          # stack rows for MXU fill

    # ---- query branch: *sqrt(D) + LayerNorm (batch-invariant; evaluated once
    #      per grid step, and the grid has exactly one step per TensorCore) ----
    q0 = query_ref[...].astype(f32) * scale
    mu_q = jnp.mean(q0, axis=-1, keepdims=True)
    qc = q0 - mu_q
    var_q = jnp.mean(qc * qc, axis=-1, keepdims=True)
    qry = qc * lax.rsqrt(var_q + eps) * qg_ref[...] + qb_ref[...]          # (Q, D)

    # ---- single fused projection: rows [query ; latents], cols [Wq|Wk|Wv] ----
    # One MXU call replaces the previous q-proj + kv-proj pair; f32 accumulate.
    lhs = jnp.concatenate([qry, lat2], axis=0)                             # (Q+Bb*N, D)
    qkv = jnp.dot(lhs.astype(mxdt), wqkv_ref[...],
                  preferred_element_type=f32) + bqkv_ref[...]              # (Q+Bb*N, 3D)

    inv_sqrt_dh = f32(1.0 / math.sqrt(Dh))
    qproj = qkv[:Q, :D] * inv_sqrt_dh      # fold 1/sqrt(Dh) into the tiny q rows
    k = qkv[Q:, D:2 * D]                                                   # (Bb*N, D)
    v = qkv[Q:, 2 * D:]                                                    # (Bb*N, D)

    # q @ k^T via dot_general contracting last dims (no materialized transpose).
    dn = (((1,), (1,)), ((), ()))

    # Static loop is fine at Bb <= 2.
    # TODO(synk): if Bb grows (large B folded into one step), switch to
    # lax.fori_loop(unroll=True) / one fused (Q, Bb*N) score matmul with a
    # segmented softmax to bound vreg live ranges.
    for b in range(Bb):
        kb = k[b * N:(b + 1) * N]                                          # (N, D)
        vb = v[b * N:(b + 1) * N]                                          # (N, D)
        head_outs = []
        # NOTE: per-head lane slices are only clean because Dh is a multiple of
        # 128 in the default config (H=1, D=128); for H>1 with Dh<128 a fused
        # (Q,H,Dh) formulation would avoid sub-lane relayouts.
        for h in range(H):
            qh = qproj[:, h * Dh:(h + 1) * Dh]                             # (Q, Dh)
            kh = kb[:, h * Dh:(h + 1) * Dh]                                # (N, Dh)
            vh = vb[:, h * Dh:(h + 1) * Dh]                                # (N, Dh)
            s = lax.dot_general(qh.astype(mxdt), kh.astype(mxdt), dn,
                                preferred_element_type=f32)                # (Q, N)
            m = jnp.max(s, axis=-1, keepdims=True)
            e = jnp.exp(s - m)
            # Exact normalization so the returned attention rows sum to 1
            # (review correctness concern about approx reciprocal).
            p = e / jnp.sum(e, axis=-1, keepdims=True)
            attnw_ref[b, h] = p
            head_outs.append(jnp.dot(p.astype(mxdt), vh.astype(mxdt),
                                     preferred_element_type=f32))          # (Q, Dh)
        attn_b = head_outs[0] if H == 1 else jnp.concatenate(head_outs, axis=-1)  # (Q, D)

        # Output projection W_o has a single output column: VPU multiply +
        # lane reduction instead of an MXU matmul wasting 127/128 of the tile.
        logits_ref[b] = (jnp.sum(attn_b * wo_ref[...], axis=-1, keepdims=True)
                         + bo_ref[...])                                    # (Q, 1)


# ------------------------------ wrapper --------------------------------------

def _num_tensorcores() -> int:
    """Grid steps per chip: 2 TensorCores on v7x, 1 on v5e/v6e (conservative 1
    on anything unrecognized)."""
    try:
        kind = jax.devices()[0].device_kind.lower()
    except Exception:
        return 1
    return 2 if "v7" in kind else 1


@functools.partial(jax.jit, static_argnames=("num_heads",))
def attention_pooling(latents_bdn, kparams, *, num_heads: int):
    """latents_bdn: (B, d_model, N) exactly as the PyTorch module receives it.

    kparams must come from prepare_kernel_params(): weights are pre-fused and
    pre-cast (bf16) there so no per-call concat/cast HLOs run here.
    """
    B, D, N = latents_bdn.shape
    Q = kparams["query"].shape[0]
    H = num_heads
    assert D % H == 0

    # One grid step per TensorCore; force G=1 if it would not divide B so no
    # zero-padding / remainder handling is ever needed.
    num_tc = _num_tensorcores()
    G = num_tc if (num_tc <= B and B % num_tc == 0) else 1
    Bb = B // G

    # TODO(synk): in production the producer should emit (B, N, D) directly
    # (or XLA should fuse this into the pallas_call input); the transpose is
    # kept only to honor the module's (B, d_model, N) input contract (~16 KiB).
    latents = jnp.transpose(latents_bdn, (0, 2, 1))

    pos = kparams["pos_enc"][-N:]          # static slice of an 8 KiB buffer

    kernel = functools.partial(attention_pooling_kernel, num_heads=H, d_model=D,
                               batch_block=Bb, seq_len=N)

    full = lambda shp: pl.BlockSpec(shp, lambda g, _n=len(shp): (0,) * _n)

    out_shapes = (
        jax.ShapeDtypeStruct((B, Q, 1), jnp.float32),
        jax.ShapeDtypeStruct((B, H, Q, N), jnp.float32),
    )

    logits, attn_weights = pl.pallas_call(
        kernel,
        out_shape=out_shapes,
        grid=(G,),
        in_specs=[
            pl.BlockSpec((Bb, N, D), lambda g: (g, 0, 0)),         # latents block
            full((N, D)),                                          # pos enc
            full((Q, D)),                                          # query
            full((1, D)), full((1, D)),                            # latents_norm g/b
            full((1, D)), full((1, D)),                            # query_norm g/b
            full((D, 3 * D)), full((1, 3 * D)),                    # fused W_qkv, b_qkv
            full((1, D)), full((1, 1)),                            # W_o row, b_o
        ],
        out_specs=(
            pl.BlockSpec((Bb, Q, 1), lambda g: (g, 0, 0)),
            pl.BlockSpec((Bb, H, Q, N), lambda g: (g, 0, 0, 0)),
        ),
        compiler_params=pltpu.CompilerParams(
            dimension_semantics=("parallel",)),
    )(
        latents, pos, kparams["query"],
        kparams["ln_lat_g_row"], kparams["ln_lat_b_row"],
        kparams["ln_q_g_row"], kparams["ln_q_b_row"],
        kparams["w_qkv"], kparams["b_qkv"],
        kparams["w_o_row"], kparams["b_o_row"],
    )
    return logits, attn_weights


# --------------------------- parameter setup ----------------------------------

def positional_encoding_jax(d_model: int, seq_len: int) -> jnp.ndarray:
    assert d_model % 2 == 0
    pos = jnp.arange(seq_len, dtype=jnp.float32)[:, None]
    i = jnp.arange(0, d_model, 2, dtype=jnp.float32)
    angle = pos * jnp.exp(i * -(math.log(10000.0) / d_model))
    pe = jnp.zeros((seq_len, d_model), jnp.float32)
    pe = pe.at[:, 0::2].set(jnp.sin(angle))
    pe = pe.at[:, 1::2].set(jnp.cos(angle))
    return pe


def init_params(key, *, num_outputs, d_model, max_seq_len):
    """Reference (f32, unfused) parameters, matching the PyTorch module."""
    ks = jax.random.split(key, 6)
    tn = lambda k, shp: (jax.random.truncated_normal(k, -2.0, 2.0, shp, jnp.float32) * 0.02)
    # Torch Linear stores W as (out, in); kernel/reference consume (in, out) so y = x @ W.
    w_q_t = tn(ks[0], (d_model, d_model))
    w_k_t = tn(ks[1], (d_model, d_model))
    w_v_t = tn(ks[2], (d_model, d_model))
    w_o_t = tn(ks[3], (1, d_model))
    return dict(
        query=tn(ks[4], (num_outputs, d_model)),
        pos_enc=positional_encoding_jax(d_model, max_seq_len)[::-1],   # ReversedPositionalEncoding
        ln_lat_g=jnp.ones((d_model,), jnp.float32),
        ln_lat_b=jnp.zeros((d_model,), jnp.float32),
        ln_q_g=jnp.ones((d_model,), jnp.float32),
        ln_q_b=jnp.zeros((d_model,), jnp.float32),
        w_q=w_q_t.T, b_q=jnp.zeros((d_model,), jnp.float32),
        w_k=w_k_t.T, b_k=jnp.zeros((d_model,), jnp.float32),
        w_v=w_v_t.T, b_v=jnp.zeros((d_model,), jnp.float32),
        w_o=w_o_t.T, b_o=jnp.zeros((1,), jnp.float32),
    )


def prepare_kernel_params(params, weights_dtype=jnp.bfloat16):
    """One-time (outside jit) fusion + cast of the parameters into the exact
    layout/dtype the kernel consumes, so the jitted wrapper issues no per-call
    concat / cast / reshape HLOs."""
    D = params["w_q"].shape[0]
    row = lambda a: a.reshape(1, -1).astype(jnp.float32)
    return dict(
        query=params["query"].astype(jnp.float32),
        pos_enc=params["pos_enc"].astype(jnp.float32),
        ln_lat_g_row=row(params["ln_lat_g"]), ln_lat_b_row=row(params["ln_lat_b"]),
        ln_q_g_row=row(params["ln_q_g"]), ln_q_b_row=row(params["ln_q_b"]),
        # Fused [W_q | W_k | W_v] -> single (D, 3D) bf16 weight (one MXU call,
        # half the weight HBM bytes); biases stay f32.
        w_qkv=jnp.concatenate([params["w_q"], params["w_k"], params["w_v"]],
                              axis=1).astype(weights_dtype),
        b_qkv=jnp.concatenate([params["b_q"], params["b_k"], params["b_v"]]
                              ).reshape(1, 3 * D).astype(jnp.float32),
        w_o_row=params["w_o"].reshape(1, D).astype(jnp.float32),   # VPU path stays f32
        b_o_row=params["b_o"].reshape(1, 1).astype(jnp.float32),
    )


# ---------------------------- pure-JAX reference ------------------------------

def reference_forward(latents_bdn, params, *, num_heads):
    B, D, N = latents_bdn.shape
    H = num_heads
    Dh = D // H
    x = jnp.transpose(latents_bdn, (0, 2, 1)) * math.sqrt(D)
    x = x + params["pos_enc"][-N:][None]
    mu = x.mean(-1, keepdims=True)
    var = ((x - mu) ** 2).mean(-1, keepdims=True)
    lat = (x - mu) / jnp.sqrt(var + 1e-5) * params["ln_lat_g"] + params["ln_lat_b"]
    q0 = params["query"] * math.sqrt(D)
    mu_q = q0.mean(-1, keepdims=True)
    var_q = ((q0 - mu_q) ** 2).mean(-1, keepdims=True)
    qry = (q0 - mu_q) / jnp.sqrt(var_q + 1e-5) * params["ln_q_g"] + params["ln_q_b"]
    qry = jnp.broadcast_to(qry[None], (B,) + qry.shape)
    q = (qry @ params["w_q"] + params["b_q"]).reshape(B, -1, H, Dh)
    k = (lat @ params["w_k"] + params["b_k"]).reshape(B, N, H, Dh)
    v = (lat @ params["w_v"] + params["b_v"]).reshape(B, N, H, Dh)
    s = jnp.einsum("bqhd,bkhd->bhqk", q, k) / math.sqrt(Dh)
    p = jax.nn.softmax(s, axis=-1)
    attn = jnp.einsum("bhqk,bkhd->bqhd", p, v).reshape(B, q.shape[1], H * Dh)
    logits = attn @ params["w_o"] + params["b_o"]
    return logits, p


# ----------------------------------- main -------------------------------------

if __name__ == "__main__":
    B, d_model, seq_len = 2, 128, 16
    num_outputs, num_heads, max_seq_len = 8, 1, 32

    key = jax.random.PRNGKey(0)
    k_lat, k_par = jax.random.split(key)
    latents = jax.random.normal(k_lat, (B, d_model, seq_len), jnp.float32)  # (B, d_model, N)
    params = init_params(k_par, num_outputs=num_outputs, d_model=d_model,
                         max_seq_len=max_seq_len)
    kparams = prepare_kernel_params(params)   # one-time fuse + bf16 cast, outside jit

    logits, attn_weights = attention_pooling(latents, kparams, num_heads=num_heads)
    jax.block_until_ready((logits, attn_weights))

    ref_logits, ref_attn = reference_forward(latents, params, num_heads=num_heads)
    assert logits.shape == (B, num_outputs, 1)
    assert attn_weights.shape == (B, num_heads, num_outputs, seq_len)
    # Tolerance 5e-3: bf16 MXU operands (weights + activation casts) bound the
    # observed error at the few-1e-3 level for logits; attention weights use
    # exact softmax normalization (rows sum to 1) and sit well inside this.
    assert jnp.allclose(logits, ref_logits, atol=5e-3, rtol=5e-3)
    assert jnp.allclose(attn_weights, ref_attn, atol=5e-3, rtol=5e-3)

    print("KERNEL_OK")
</pallas_src>

<mosaic_0001>
module attributes {stable_mosaic.version = 11 : i64} {
  func.func @attention_pooling_kernel(%arg0: i32, %arg1: memref<2x16x128xf32, #tpu.memory_space<vmem>>, %arg2: memref<16x128xf32, #tpu.memory_space<vmem>>, %arg3: memref<8x128xf32, #tpu.memory_space<vmem>>, %arg4: memref<1x128xf32, #tpu.memory_space<vmem>>, %arg5: memref<1x128xf32, #tpu.memory_space<vmem>>, %arg6: memref<1x128xf32, #tpu.memory_space<vmem>>, %arg7: memref<1x128xf32, #tpu.memory_space<vmem>>, %arg8: memref<128x384xbf16, #tpu.memory_space<vmem>>, %arg9: memref<1x384xf32, #tpu.memory_space<vmem>>, %arg10: memref<1x128xf32, #tpu.memory_space<vmem>>, %arg11: memref<1x1xf32, #tpu.memory_space<vmem>>, %arg12: memref<2x8x1xf32, #tpu.memory_space<vmem>>, %arg13: memref<2x1x8x16xf32, #tpu.memory_space<vmem>>) attributes {dimension_semantics = [#tpu.dimension_semantics<parallel>], iteration_bounds = array<i64: 1>, scalar_prefetch = 0 : i64, scratch_operands = 0 : i64, tpu.core_type = #tpu.core_type<tc>, window_params = [{transform_indices = @transform_0, window_bounds = array<i64: 2, 16, 128>}, {pipeline_mode = #tpu.pipeline_mode<synchronous>, transform_indices = @transform_1, window_bounds = array<i64: 16, 128>}, {pipeline_mode = #tpu.pipeline_mode<synchronous>, transform_indices = @transform_2, window_bounds = array<i64: 8, 128>}, {pipeline_mode = #tpu.pipeline_mode<synchronous>, transform_indices = @transform_3, window_bounds = array<i64: 1, 128>}, {pipeline_mode = #tpu.pipeline_mode<synchronous>, transform_indices = @transform_4, window_bounds = array<i64: 1, 128>}, {pipeline_mode = #tpu.pipeline_mode<synchronous>, transform_indices = @transform_5, window_bounds = array<i64: 1, 128>}, {pipeline_mode = #tpu.pipeline_mode<synchronous>, transform_indices = @transform_6, window_bounds = array<i64: 1, 128>}, {pipeline_mode = #tpu.pipeline_mode<synchronous>, transform_indices = @transform_7, window_bounds = array<i64: 128, 384>}, {pipeline_mode = #tpu.pipeline_mode<synchronous>, transform_indices = @transform_8, window_bounds = array<i64: 1, 384>}, {pipeline_mode = #tpu.pipeline_mode<synchronous>, transform_indices = @transform_9, window_bounds = array<i64: 1, 128>}, {pipeline_mode = #tpu.pipeline_mode<synchronous>, transform_indices = @transform_10, window_bounds = array<i64: 1, 1>}, {transform_indices = @transform_11, window_bounds = array<i64: 2, 8, 1>}, {transform_indices = @transform_12, window_bounds = array<i64: 2, 1, 8, 16>}]} {
    %c0 = arith.constant 0 : index
    %c0_0 = arith.constant 0 : index
    %c0_1 = arith.constant 0 : index
    %0 = vector.load %arg1[%c0, %c0_0, %c0_1] : memref<2x16x128xf32, #tpu.memory_space<vmem>>, vector<2x16x128xf32>
    %cst = arith.constant 11.3137083 : f32
    %1 = vector.broadcast %cst : f32 to vector<2x16x128xf32>
    %2 = arith.mulf %0, %1 : vector<2x16x128xf32>
    %c0_2 = arith.constant 0 : index
    %c0_3 = arith.constant 0 : index
    %3 = vector.load %arg2[%c0_2, %c0_3] : memref<16x128xf32, #tpu.memory_space<vmem>>, vector<16x128xf32>
    %4 = vector.shape_cast %3 : vector<16x128xf32> to vector<1x16x128xf32>
    %5 = vector.broadcast %4 : vector<1x16x128xf32> to vector<2x16x128xf32>
    %6 = arith.addf %2, %5 : vector<2x16x128xf32>
    %cst_4 = arith.constant dense<0.000000e+00> : vector<2x16xf32>
    %7 = vector.multi_reduction <add>, %6, %cst_4 [2] : vector<2x16x128xf32> to vector<2x16xf32>
    %8 = vector.shape_cast %7 : vector<2x16xf32> to vector<2x16x1xf32>
    %cst_5 = arith.constant 1.280000e+02 : f32
    %9 = vector.broadcast %cst_5 : f32 to vector<2x16x1xf32>
    %10 = arith.divf %8, %9 : vector<2x16x1xf32>
    %11 = vector.broadcast %10 : vector<2x16x1xf32> to vector<2x16x128xf32>
    %12 = arith.subf %6, %11 : vector<2x16x128xf32>
    %13 = arith.mulf %12, %12 : vector<2x16x128xf32>
    %cst_6 = arith.constant dense<0.000000e+00> : vector<2x16xf32>
    %14 = vector.multi_reduction <add>, %13, %cst_6 [2] : vector<2x16x128xf32> to vector<2x16xf32>
    %15 = vector.shape_cast %14 : vector<2x16xf32> to vector<2x16x1xf32>
    %cst_7 = arith.constant 1.280000e+02 : f32
    %16 = vector.broadcast %cst_7 : f32 to vector<2x16x1xf32>
    %17 = arith.divf %15, %16 : vector<2x16x1xf32>
    %cst_8 = arith.constant 9.99999974E-6 : f32
    %18 = vector.broadcast %cst_8 : f32 to vector<2x16x1xf32>
    %19 = arith.addf %17, %18 : vector<2x16x1xf32>
    %20 = math.rsqrt %19 : vector<2x16x1xf32>
    %21 = vector.broadcast %20 : vector<2x16x1xf32> to vector<2x16x128xf32>
    %22 = arith.mulf %12, %21 : vector<2x16x128xf32>
    %c0_9 = arith.constant 0 : index
    %c0_10 = arith.constant 0 : index
    %23 = vector.load %arg4[%c0_9, %c0_10] : memref<1x128xf32, #tpu.memory_space<vmem>>, vector<1x128xf32>
    %24 = vector.shape_cast %23 : vector<1x128xf32> to vector<1x1x128xf32>
    %25 = vector.broadcast %24 : vector<1x1x128xf32> to vector<2x16x128xf32>
    %26 = arith.mulf %22, %25 : vector<2x16x128xf32>
    %c0_11 = arith.constant 0 : index
    %c0_12 = arith.constant 0 : index
    %27 = vector.load %arg5[%c0_11, %c0_12] : memref<1x128xf32, #tpu.memory_space<vmem>>, vector<1x128xf32>
    %28 = vector.shape_cast %27 : vector<1x128xf32> to vector<1x1x128xf32>
    %29 = vector.broadcast %28 : vector<1x1x128xf32> to vector<2x16x128xf32>
    %30 = arith.addf %26, %29 : vector<2x16x128xf32>
    %31 = vector.shape_cast %30 : vector<2x16x128xf32> to vector<32x128xf32>
    %c0_13 = arith.constant 0 : index
    %c0_14 = arith.constant 0 : index
    %32 = vector.load %arg3[%c0_13, %c0_14] : memref<8x128xf32, #tpu.memory_space<vmem>>, vector<8x128xf32>
    %cst_15 = arith.constant 11.3137083 : f32
    %33 = vector.broadcast %cst_15 : f32 to vector<8x128xf32>
    %34 = arith.mulf %32, %33 : vector<8x128xf32>
    %cst_16 = arith.constant dense<0.000000e+00> : vector<8xf32>
    %35 = vector.multi_reduction <add>, %34, %cst_16 [1] : vector<8x128xf32> to vector<8xf32>
    %36 = vector.shape_cast %35 : vector<8xf32> to vector<8x1xf32>
    %cst_17 = arith.constant 1.280000e+02 : f32
    %37 = vector.broadcast %cst_17 : f32 to vector<8x1xf32>
    %38 = arith.divf %36, %37 : vector<8x1xf32>
    %39 = vector.broadcast %38 : vector<8x1xf32> to vector<8x128xf32>
    %40 = arith.subf %34, %39 : vector<8x128xf32>
    %41 = arith.mulf %40, %40 : vector<8x128xf32>
    %cst_18 = arith.constant dense<0.000000e+00> : vector<8xf32>
    %42 = vector.multi_reduction <add>, %41, %cst_18 [1] : vector<8x128xf32> to vector<8xf32>
    %43 = vector.shape_cast %42 : vector<8xf32> to vector<8x1xf32>
    %cst_19 = arith.constant 1.280000e+02 : f32
    %44 = vector.broadcast %cst_19 : f32 to vector<8x1xf32>
    %45 = arith.divf %43, %44 : vector<8x1xf32>
    %cst_20 = arith.constant 9.99999974E-6 : f32
    %46 = vector.broadcast %cst_20 : f32 to vector<8x1xf32>
    %47 = arith.addf %45, %46 : vector<8x1xf32>
    %48 = math.rsqrt %47 : vector<8x1xf32>
    %49 = vector.broadcast %48 : vector<8x1xf32> to vector<8x128xf32>
    %50 = arith.mulf %40, %49 : vector<8x128xf32>
    %c0_21 = arith.constant 0 : index
    %c0_22 = arith.constant 0 : index
    %51 = vector.load %arg6[%c0_21, %c0_22] : memref<1x128xf32, #tpu.memory_space<vmem>>, vector<1x128xf32>
    %52 = vector.broadcast %51 : vector<1x128xf32> to vector<8x128xf32>
    %53 = arith.mulf %50, %52 : vector<8x128xf32>
    %c0_23 = arith.constant 0 : index
    %c0_24 = arith.constant 0 : index
    %54 = vector.load %arg7[%c0_23, %c0_24] : memref<1x128xf32, #tpu.memory_space<vmem>>, vector<1x128xf32>
    %55 = vector.broadcast %54 : vector<1x128xf32> to vector<8x128xf32>
    %56 = arith.addf %53, %55 : vector<8x128xf32>
    %57 = tpu.concatenate %56, %31 in 0 : vector<8x128xf32>, vector<32x128xf32> -> vector<40x128xf32>
    %58 = arith.truncf %57 : vector<40x128xf32> to vector<40x128xbf16>
    %c0_25 = arith.constant 0 : index
    %c0_26 = arith.constant 0 : index
    %59 = vector.load %arg8[%c0_25, %c0_26] : memref<128x384xbf16, #tpu.memory_space<vmem>>, vector<128x384xbf16>
    %cst_27 = arith.constant dense<0.000000e+00> : vector<40x384xf32>
    %60 = tpu.matmul %58, %59, %cst_27 {dimension_numbers = #tpu.dot_dimension_numbers<[1], [0], [0], [1], [0, 0, 1, 1], [], []>} : vector<40x128xbf16>, vector<128x384xbf16>, vector<40x384xf32> -> vector<40x384xf32>
    %c0_28 = arith.constant 0 : index
    %c0_29 = arith.constant 0 : index
    %61 = vector.load %arg9[%c0_28, %c0_29] : memref<1x384xf32, #tpu.memory_space<vmem>>, vector<1x384xf32>
    %62 = vector.broadcast %61 : vector<1x384xf32> to vector<40x384xf32>
    %63 = arith.addf %60, %62 : vector<40x384xf32>
    %64 = vector.extract_strided_slice %63 {offsets = [0, 0], sizes = [8, 128], strides = [1, 1]} : vector<40x384xf32> to vector<8x128xf32>
    %cst_30 = arith.constant 0.0883883461 : f32
    %65 = vector.broadcast %cst_30 : f32 to vector<8x128xf32>
    %66 = arith.mulf %64, %65 : vector<8x128xf32>
    %67 = vector.extract_strided_slice %63 {offsets = [8, 128], sizes = [32, 128], strides = [1, 1]} : vector<40x384xf32> to vector<32x128xf32>
    %68 = vector.extract_strided_slice %63 {offsets = [8, 256], sizes = [32, 128], strides = [1, 1]} : vector<40x384xf32> to vector<32x128xf32>
    %69 = vector.extract_strided_slice %67 {offsets = [0, 0], sizes = [16, 128], strides = [1, 1]} : vector<32x128xf32> to vector<16x128xf32>
    %70 = vector.extract_strided_slice %68 {offsets = [0, 0], sizes = [16, 128], strides = [1, 1]} : vector<32x128xf32> to vector<16x128xf32>
    %71 = arith.truncf %66 : vector<8x128xf32> to vector<8x128xbf16>
    %72 = arith.truncf %69 : vector<16x128xf32> to vector<16x128xbf16>
    %cst_31 = arith.constant dense<0.000000e+00> : vector<8x16xf32>
    %73 = tpu.matmul %71, %72, %cst_31 {dimension_numbers = #tpu.dot_dimension_numbers<[1], [1], [0], [0], [0, 0, 1, 0], [], []>} : vector<8x128xbf16>, vector<16x128xbf16>, vector<8x16xf32> -> vector<8x16xf32>
    %cst_32 = arith.constant dense<0xFF800000> : vector<8xf32>
    %74 = vector.multi_reduction <maximumf>, %73, %cst_32 [1] : vector<8x16xf32> to vector<8xf32>
    %75 = vector.shape_cast %74 : vector<8xf32> to vector<8x1xf32>
    %76 = vector.broadcast %75 : vector<8x1xf32> to vector<8x16xf32>
    %77 = arith.subf %73, %76 : vector<8x16xf32>
    %78 = math.exp %77 : vector<8x16xf32>
    %cst_33 = arith.constant dense<0.000000e+00> : vector<8xf32>
    %79 = vector.multi_reduction <add>, %78, %cst_33 [1] : vector<8x16xf32> to vector<8xf32>
    %80 = vector.shape_cast %79 : vector<8xf32> to vector<8x1xf32>
    %81 = vector.broadcast %80 : vector<8x1xf32> to vector<8x16xf32>
    %82 = arith.divf %78, %81 : vector<8x16xf32>
    %c0_34 = arith.constant 0 : index
    %c0_35 = arith.constant 0 : index
    %c0_36 = arith.constant 0 : index
    %c0_37 = arith.constant 0 : index
    %83 = vector.load %arg13[%c0_34, %c0_35, %c0_36, %c0_37] : memref<2x1x8x16xf32, #tpu.memory_space<vmem>>, vector<1x1x8x16xf32>
    %84 = vector.shape_cast %83 : vector<1x1x8x16xf32> to vector<8x16xf32>
    %85 = vector.shape_cast %82 : vector<8x16xf32> to vector<1x1x8x16xf32>
    tpu.vector_store %arg13[%c0_34, %c0_35, %c0_36, %c0_37], %85 {strides = array<i32>} : memref<2x1x8x16xf32, #tpu.memory_space<vmem>>, vector<1x1x8x16xf32>,
    %86 = arith.truncf %82 : vector<8x16xf32> to vector<8x16xbf16>
    %87 = arith.truncf %70 : vector<16x128xf32> to vector<16x128xbf16>
    %cst_38 = arith.constant dense<0.000000e+00> : vector<8x128xf32>
    %88 = tpu.matmul %86, %87, %cst_38 {dimension_numbers = #tpu.dot_dimension_numbers<[1], [0], [0], [1], [0, 0, 1, 1], [], []>} : vector<8x16xbf16>, vector<16x128xbf16>, vector<8x128xf32> -> vector<8x128xf32>
    %c0_39 = arith.constant 0 : index
    %c0_40 = arith.constant 0 : index
    %89 = vector.load %arg10[%c0_39, %c0_40] : memref<1x128xf32, #tpu.memory_space<vmem>>, vector<1x128xf32>
    %90 = vector.broadcast %89 : vector<1x128xf32> to vector<8x128xf32>
    %91 = arith.mulf %88, %90 : vector<8x128xf32>
    %cst_41 = arith.constant dense<0.000000e+00> : vector<8xf32>
    %92 = vector.multi_reduction <add>, %91, %cst_41 [1] : vector<8x128xf32> to vector<8xf32>
    %93 = vector.shape_cast %92 : vector<8xf32> to vector<8x1xf32>
    %c0_42 = arith.constant 0 : index
    %c0_43 = arith.constant 0 : index
    %94 = vector.load %arg11[%c0_42, %c0_43] : memref<1x1xf32, #tpu.memory_space<vmem>>, vector<1x1xf32>
    %95 = vector.broadcast %94 : vector<1x1xf32> to vector<8x1xf32>
    %96 = arith.addf %93, %95 : vector<8x1xf32>
    %c0_44 = arith.constant 0 : index
    %c0_45 = arith.constant 0 : index
    %c0_46 = arith.constant 0 : index
    %97 = vector.load %arg12[%c0_44, %c0_45, %c0_46] : memref<2x8x1xf32, #tpu.memory_space<vmem>>, vector<1x8x1xf32>
    %98 = vector.shape_cast %97 : vector<1x8x1xf32> to vector<8x1xf32>
    %99 = vector.shape_cast %96 : vector<8x1xf32> to vector<1x8x1xf32>
    tpu.vector_store %arg12[%c0_44, %c0_45, %c0_46], %99 {strides = array<i32>} : memref<2x8x1xf32, #tpu.memory_space<vmem>>, vector<1x8x1xf32>,
    %100 = vector.extract_strided_slice %67 {offsets = [16, 0], sizes = [16, 128], strides = [1, 1]} : vector<32x128xf32> to vector<16x128xf32>
    %101 = vector.extract_strided_slice %68 {offsets = [16, 0], sizes = [16, 128], strides = [1, 1]} : vector<32x128xf32> to vector<16x128xf32>
    %102 = arith.truncf %66 : vector<8x128xf32> to vector<8x128xbf16>
    %103 = arith.truncf %100 : vector<16x128xf32> to vector<16x128xbf16>
    %cst_47 = arith.constant dense<0.000000e+00> : vector<8x16xf32>
    %104 = tpu.matmul %102, %103, %cst_47 {dimension_numbers = #tpu.dot_dimension_numbers<[1], [1], [0], [0], [0, 0, 1, 0], [], []>} : vector<8x128xbf16>, vector<16x128xbf16>, vector<8x16xf32> -> vector<8x16xf32>
    %cst_48 = arith.constant dense<0xFF800000> : vector<8xf32>
    %105 = vector.multi_reduction <maximumf>, %104, %cst_48 [1] : vector<8x16xf32> to vector<8xf32>
    %106 = vector.shape_cast %105 : vector<8xf32> to vector<8x1xf32>
    %107 = vector.broadcast %106 : vector<8x1xf32> to vector<8x16xf32>
    %108 = arith.subf %104, %107 : vector<8x16xf32>
    %109 = math.exp %108 : vector<8x16xf32>
    %cst_49 = arith.constant dense<0.000000e+00> : vector<8xf32>
    %110 = vector.multi_reduction <add>, %109, %cst_49 [1] : vector<8x16xf32> to vector<8xf32>
    %111 = vector.shape_cast %110 : vector<8xf32> to vector<8x1xf32>
    %112 = vector.broadcast %111 : vector<8x1xf32> to vector<8x16xf32>
    %113 = arith.divf %109, %112 : vector<8x16xf32>
    %c1 = arith.constant 1 : index
    %c0_50 = arith.constant 0 : index
    %c0_51 = arith.constant 0 : index
    %c0_52 = arith.constant 0 : index
    %114 = vector.load %arg13[%c1, %c0_50, %c0_51, %c0_52] : memref<2x1x8x16xf32, #tpu.memory_space<vmem>>, vector<1x1x8x16xf32>
    %115 = vector.shape_cast %114 : vector<1x1x8x16xf32> to vector<8x16xf32>
    %116 = vector.shape_cast %113 : vector<8x16xf32> to vector<1x1x8x16xf32>
    tpu.vector_store %arg13[%c1, %c0_50, %c0_51, %c0_52], %116 {strides = array<i32>} : memref<2x1x8x16xf32, #tpu.memory_space<vmem>>, vector<1x1x8x16xf32>,
    %117 = arith.truncf %113 : vector<8x16xf32> to vector<8x16xbf16>
    %118 = arith.truncf %101 : vector<16x128xf32> to vector<16x128xbf16>
    %cst_53 = arith.constant dense<0.000000e+00> : vector<8x128xf32>
    %119 = tpu.matmul %117, %118, %cst_53 {dimension_numbers = #tpu.dot_dimension_numbers<[1], [0], [0], [1], [0, 0, 1, 1], [], []>} : vector<8x16xbf16>, vector<16x128xbf16>, vector<8x128xf32> -> vector<8x128xf32>
    %c0_54 = arith.constant 0 : index
    %c0_55 = arith.constant 0 : index
    %120 = vector.load %arg10[%c0_54, %c0_55] : memref<1x128xf32, #tpu.memory_space<vmem>>, vector<1x128xf32>
    %121 = vector.broadcast %120 : vector<1x128xf32> to vector<8x128xf32>
    %122 = arith.mulf %119, %121 : vector<8x128xf32>
    %cst_56 = arith.constant dense<0.000000e+00> : vector<8xf32>
    %123 = vector.multi_reduction <add>, %122, %cst_56 [1] : vector<8x128xf32> to vector<8xf32>
    %124 = vector.shape_cast %123 : vector<8xf32> to vector<8x1xf32>
    %c0_57 = arith.constant 0 : index
    %c0_58 = arith.constant 0 : index
    %125 = vector.load %arg11[%c0_57, %c0_58] : memref<1x1xf32, #tpu.memory_space<vmem>>, vector<1x1xf32>
    %126 = vector.broadcast %125 : vector<1x1xf32> to vector<8x1xf32>
    %127 = arith.addf %124, %126 : vector<8x1xf32>
    %c1_59 = arith.constant 1 : index
    %c0_60 = arith.constant 0 : index
    %c0_61 = arith.constant 0 : index
    %128 = vector.load %arg12[%c1_59, %c0_60, %c0_61] : memref<2x8x1xf32, #tpu.memory_space<vmem>>, vector<1x8x1xf32>
    %129 = vector.shape_cast %128 : vector<1x8x1xf32> to vector<8x1xf32>
    %130 = vector.shape_cast %127 : vector<8x1xf32> to vector<1x8x1xf32>
    tpu.vector_store %arg12[%c1_59, %c0_60, %c0_61], %130 {strides = array<i32>} : memref<2x8x1xf32, #tpu.memory_space<vmem>>, vector<1x8x1xf32>,
    return
  }
  func.func @transform_0(%arg0: i32) -> (i32, i32, i32) {
    %c0_i32 = arith.constant 0 : i32
    %c0_i32_0 = arith.constant 0 : i32
    %c0_i32_1 = arith.constant 0 : i32
    return %arg0, %c0_i32, %c0_i32_0 : i32, i32, i32
  }
  func.func @transform_1(%arg0: i32) -> (i32, i32) {
    %c0_i32 = arith.constant 0 : i32
    %c0_i32_0 = arith.constant 0 : i32
    %c0_i32_1 = arith.constant 0 : i32
    return %c0_i32, %c0_i32_0 : i32, i32
  }
  func.func @transform_2(%arg0: i32) -> (i32, i32) {
    %c0_i32 = arith.constant 0 : i32
    %c0_i32_0 = arith.constant 0 : i32
    %c0_i32_1 = arith.constant 0 : i32
    return %c0_i32, %c0_i32_0 : i32, i32
  }
  func.func @transform_3(%arg0: i32) -> (i32, i32) {
    %c0_i32 = arith.constant 0 : i32
    %c0_i32_0 = arith.constant 0 : i32
    %c0_i32_1 = arith.constant 0 : i32
    return %c0_i32, %c0_i32_0 : i32, i32
  }
  func.func @transform_4(%arg0: i32) -> (i32, i32) {
    %c0_i32 = arith.constant 0 : i32
    %c0_i32_0 = arith.constant 0 : i32
    %c0_i32_1 = arith.constant 0 : i32
    return %c0_i32, %c0_i32_0 : i32, i32
  }
  func.func @transform_5(%arg0: i32) -> (i32, i32) {
    %c0_i32 = arith.constant 0 : i32
    %c0_i32_0 = arith.constant 0 : i32
    %c0_i32_1 = arith.constant 0 : i32
    return %c0_i32, %c0_i32_0 : i32, i32
  }
  func.func @transform_6(%arg0: i32) -> (i32, i32) {
    %c0_i32 = arith.constant 0 : i32
    %c0_i32_0 = arith.constant 0 : i32
    %c0_i32_1 = arith.constant 0 : i32
    return %c0_i32, %c0_i32_0 : i32, i32
  }
  func.func @transform_7(%arg0: i32) -> (i32, i32) {
    %c0_i32 = arith.constant 0 : i32
    %c0_i32_0 = arith.constant 0 : i32
    %c0_i32_1 = arith.constant 0 : i32
    return %c0_i32, %c0_i32_0 : i32, i32
  }
  func.func @transform_8(%arg0: i32) -> (i32, i32) {
    %c0_i32 = arith.constant 0 : i32
    %c0_i32_0 = arith.constant 0 : i32
    %c0_i32_1 = arith.constant 0 : i32
    return %c0_i32, %c0_i32_0 : i32, i32
  }
  func.func @transform_9(%arg0: i32) -> (i32, i32) {
    %c0_i32 = arith.constant 0 : i32
    %c0_i32_0 = arith.constant 0 : i32
    %c0_i32_1 = arith.constant 0 : i32
    return %c0_i32, %c0_i32_0 : i32, i32
  }
  func.func @transform_10(%arg0: i32) -> (i32, i32) {
    %c0_i32 = arith.constant 0 : i32
    %c0_i32_0 = arith.constant 0 : i32
    %c0_i32_1 = arith.constant 0 : i32
    return %c0_i32, %c0_i32_0 : i32, i32
  }
  func.func @transform_11(%arg0: i32) -> (i32, i32, i32) {
    %c0_i32 = arith.constant 0 : i32
    %c0_i32_0 = arith.constant 0 : i32
    %c0_i32_1 = arith.constant 0 : i32
    return %arg0, %c0_i32, %c0_i32_0 : i32, i32, i32
  }
  func.func @transform_12(%arg0: i32) -> (i32, i32, i32, i32) {
    %c0_i32 = arith.constant 0 : i32
    %c0_i32_0 = arith.constant 0 : i32
    %c0_i32_1 = arith.constant 0 : i32
    %c0_i32_2 = arith.constant 0 : i32
    return %arg0, %c0_i32, %c0_i32_0, %c0_i32_1 : i32, i32, i32, i32
  }
}

</mosaic_0001>

<llo_original>
// kernel: attention_pooling.1
$region0: #{attention_pooling.1}
  #allocation0 [shape = 'u32[]', space=smem, size = 0x4, offset = 0x4, fixed_abs, tag = 'smem constant byte address 0x4 - core index']
  #allocation1 [shape = 'u32[144,128]{1,0:T(1,128)}', space=vmem, size = 0x12000, scoped, tag = 'internal scratch']
  #allocation2 [shape = 'f32[1,1]{1,0:T(1,128)S(1)}', space=vmem, size = 0x200, scoped, tag = 'scoped memory for attention_pooling.1']
  %s0 = inlined_call_operand.hbm [shape: f32[2,16,128], index: 0, kind: input, shape index: {}]
  %s1 = inlined_call_operand.vmem [shape: f32[16,128], index: 1, kind: input, shape index: {}]
  %s2 = inlined_call_operand.vmem [shape: f32[8,128], index: 2, kind: input, shape index: {}]
  %s3 = inlined_call_operand.vmem [shape: f32[1,128], index: 3, kind: input, shape index: {}]
  %s4 = inlined_call_operand.vmem [shape: f32[1,128], index: 4, kind: input, shape index: {}]
  %s5 = inlined_call_operand.vmem [shape: f32[1,128], index: 5, kind: input, shape index: {}]
  %s6 = inlined_call_operand.vmem [shape: f32[1,128], index: 6, kind: input, shape index: {}]
  %s7 = inlined_call_operand.hbm [shape: bf16[128,384], index: 7, kind: input, shape index: {}]
  %s8 = inlined_call_operand.vmem [shape: f32[1,384], index: 8, kind: input, shape index: {}]
  %s9 = inlined_call_operand.vmem [shape: f32[1,128], index: 9, kind: input, shape index: {}]
  %s10 = inlined_call_operand.<no memory space> [shape: f32[1,1], index: 10, kind: input, shape index: {}]
  %s11 = inlined_call_operand.vmem [shape: f32[2,8,1], index: 11, kind: output, shape index: {0}]
  %s12 = inlined_call_operand.hbm [shape: f32[2,1,8,16], index: 12, kind: output, shape index: {1}]
  %13 = xla_tuple %s11, %s12
  %s14 = sld [smem:[#allocation0]]
  $region70: #{attention_pooling.1} parent=0
    _
  %s16 = ssub.s32 1, %s14
  %s17 = scalar_select 0, %s16, %s14
  %v18 = vstv %s10
  %19 = vst [vmem:[#allocation2] sm:$0x1] %v18
  $region1: #{attention_pooling.1} parent=0
    #allocation3 [shape = 'u8[16384]{0}', space=vmem, size = 0x4000, scoped, tag = 'input window, operand 0, single buffered']
    #allocation4 [shape = 's32[1]{0}', space=sflag, size = 0x4, scoped, tag = 'scoped memory for attention_pooling.1']
    #allocation5 [shape = 's32[1]{0}', space=sflag, size = 0x4, scoped, tag = 'scoped memory for attention_pooling.1']
    #allocation6 [shape = 'u8[98304]{0}', space=vmem, size = 0x18000, scoped, tag = 'input window, operand 7, single buffered']
    #allocation7 [shape = 's32[1]{0}', space=sflag, size = 0x4, scoped, tag = 'scoped memory for attention_pooling.1']
    #allocation8 [shape = 'u8[8192]{0}', space=vmem, size = 0x2000, scoped, tag = 'output window, operand 1, single buffered']
    %20 = vsyncpa [#allocation4], 0
    %21 = vsyncpa [#allocation7], 0
    %22 = vsyncpa [#allocation5], 0
    // Predicated region
    $region2: #{attention_pooling.1} parent=1 // pred_check
      _
    $region3: #{attention_pooling.1} parent=1 // pred_check_branch
      %24 = sbr.rel (0) target = $region5
    $region4: #{attention_pooling.1} parent=1 // pred_region
      %s26 = ssub.s32 512, 512
      %27 = vsyncadd [#allocation4], %s26
      %s28 = sshll.u32 [#allocation3], 4
      %s29 = int_to_ptr.vmem [resolvable:$true] %s28
      %34 = dma.hbm_to_vmem [thread:$0]  %s0, 512, %s29, [#allocation4], 128, 128, 8
    $region5: #{attention_pooling.1} parent=1 // pred_fallthru
      _
    // Predicated region
    $region6: #{attention_pooling.1} parent=1 // pred_check
      _
    $region7: #{attention_pooling.1} parent=1 // pred_check_branch
      %36 = sbr.rel (0) target = $region9
    $region8: #{attention_pooling.1} parent=1 // pred_region
      _
    $region9: #{attention_pooling.1} parent=1 // pred_fallthru
      _
    // Predicated region
    $region10: #{attention_pooling.1} parent=1 // pred_check
      _
    $region11: #{attention_pooling.1} parent=1 // pred_check_branch
      %38 = sbr.rel (0) target = $region13
    $region12: #{attention_pooling.1} parent=1 // pred_region
      _
    $region13: #{attention_pooling.1} parent=1 // pred_fallthru
      _
    // Predicated region
    $region14: #{attention_pooling.1} parent=1 // pred_check
      _
    $region15: #{attention_pooling.1} parent=1 // pred_check_branch
      %40 = sbr.rel (0) target = $region17
    $region16: #{attention_pooling.1} parent=1 // pred_region
      _
    $region17: #{attention_pooling.1} parent=1 // pred_fallthru
      _
    // Predicated region
    $region18: #{attention_pooling.1} parent=1 // pred_check
      _
    $region19: #{attention_pooling.1} parent=1 // pred_check_branch
      %42 = sbr.rel (0) target = $region21
    $region20: #{attention_pooling.1} parent=1 // pred_region
      _
    $region21: #{attention_pooling.1} parent=1 // pred_fallthru
      _
    // Predicated region
    $region22: #{attention_pooling.1} parent=1 // pred_check
      _
    $region23: #{attention_pooling.1} parent=1 // pred_check_branch
      %44 = sbr.rel (0) target = $region25
    $region24: #{attention_pooling.1} parent=1 // pred_region
      _
    $region25: #{attention_pooling.1} parent=1 // pred_fallthru
      _
    // Predicated region
    $region26: #{attention_pooling.1} parent=1 // pred_check
      _
    $region27: #{attention_pooling.1} parent=1 // pred_check_branch
      %46 = sbr.rel (0) target = $region29
    $region28: #{attention_pooling.1} parent=1 // pred_region
      _
    $region29: #{attention_pooling.1} parent=1 // pred_fallthru
      _
    // Predicated region
    $region30: #{attention_pooling.1} parent=1 // pred_check
      _
    $region31: #{attention_pooling.1} parent=1 // pred_check_branch
      %48 = sbr.rel (0) target = $region33
    $region32: #{attention_pooling.1} parent=1 // pred_region
      %s50 = ssub.s32 3072, 3072
      %51 = vsyncadd [#allocation7], %s50
      %s52 = sshll.u32 [#allocation6], 4
      %s53 = int_to_ptr.vmem [resolvable:$true] %s52
      %58 = dma.hbm_to_vmem [thread:$0]  %s7, 3072, %s53, [#allocation7], 192, 192, 12
    $region33: #{attention_pooling.1} parent=1 // pred_fallthru
      _
    // Predicated region
    $region34: #{attention_pooling.1} parent=1 // pred_check
      _
    $region35: #{attention_pooling.1} parent=1 // pred_check_branch
      %60 = sbr.rel (0) target = $region37
    $region36: #{attention_pooling.1} parent=1 // pred_region
      _
    $region37: #{attention_pooling.1} parent=1 // pred_fallthru
      _
    // Predicated region
    $region38: #{attention_pooling.1} parent=1 // pred_check
      _
    $region39: #{attention_pooling.1} parent=1 // pred_check_branch
      %62 = sbr.rel (0) target = $region41
    $region40: #{attention_pooling.1} parent=1 // pred_region
      _
    $region41: #{attention_pooling.1} parent=1 // pred_fallthru
      _
    // Predicated region
    $region42: #{attention_pooling.1} parent=1 // pred_check
      _
    $region43: #{attention_pooling.1} parent=1 // pred_check_branch
      %64 = sbr.rel (0) target = $region45
    $region44: #{attention_pooling.1} parent=1 // pred_region
      _
    $region45: #{attention_pooling.1} parent=1 // pred_fallthru
      _
    // Predicated region
    $region46: #{attention_pooling.1} parent=1 // pred_check
      _
    $region47: #{attention_pooling.1} parent=1 // pred_check_branch
      %66 = sbr.rel (0) target = $region49
    $region48: #{attention_pooling.1} parent=1 // pred_region
      %67 = dma.done [#allocation4], 512
    $region49: #{attention_pooling.1} parent=1 // pred_fallthru
      _
    // Predicated region
    $region50: #{attention_pooling.1} parent=1 // pred_check
      _
    $region51: #{attention_pooling.1} parent=1 // pred_check_branch
      %69 = sbr.rel (0) target = $region53
    $region52: #{attention_pooling.1} parent=1 // pred_region
      %70 = dma.done [#allocation7], 3072
    $region53: #{attention_pooling.1} parent=1 // pred_fallthru
      _
    %v72 = vld [vmem:[#allocation3] sm:$0xff]
    %v73 = vld [vmem:[#allocation3 + $0x8] sm:$0xff]
    %v74 = vld [vmem:[#allocation3 + $0x10] sm:$0xff]
    %v75 = vld [vmem:[#allocation3 + $0x18] sm:$0xff]
    %v76 = vmul.f32 %v72, 11.313708
    %v77 = vmul.f32 %v73, 11.313708
    %v78 = vmul.f32 %v74, 11.313708
    %v79 = vmul.f32 %v75, 11.313708
    %v80 = vld [vmem:[%s1] sm:$0xff]
    %v81 = vld [vmem:[%s1 + $0x8] sm:$0xff]
    %v82 = vadd.f32 %v76, %v80
    %v83 = vadd.f32 %v77, %v81
    %v84 = vadd.f32 %v78, %v80
    %v85 = vadd.f32 %v79, %v81
    %86 = vadd.xlane.f32.xlu0 %v82
    %v87 = vpop.xlane.xlu0 %86
    %88 = vadd.xlane.f32.xlu0 %v83
    %v89 = vpop.xlane.xlu0 %88
    %90 = vadd.xlane.f32.xlu0 %v84
    %v91 = vpop.xlane.xlu0 %90
    %92 = vadd.xlane.f32.xlu0 %v85
    %v93 = vpop.xlane.xlu0 %92
    %v94 = vrcp.pop 128.0
    %v95 = vmul.f32 %v87, %v94
    %v96 = vmul.f32 %v89, %v94
    %v97 = vmul.f32 %v91, %v94
    %v98 = vmul.f32 %v93, %v94
    %v99 = vsub.f32 %v82, %v95
    %v100 = vsub.f32 %v83, %v96
    %v101 = vsub.f32 %v84, %v97
    %v102 = vsub.f32 %v85, %v98
    %v103 = vmul.f32 %v99, %v99
    %v104 = vmul.f32 %v100, %v100
    %v105 = vmul.f32 %v101, %v101
    %v106 = vmul.f32 %v102, %v102
    %107 = vadd.xlane.f32.xlu0 %v103
    %v108 = vpop.xlane.xlu0 %107
    %109 = vadd.xlane.f32.xlu0 %v104
    %v110 = vpop.xlane.xlu0 %109
    %111 = vadd.xlane.f32.xlu0 %v105
    %v112 = vpop.xlane.xlu0 %111
    %113 = vadd.xlane.f32.xlu0 %v106
    %v114 = vpop.xlane.xlu0 %113
    %v115 = vmul.f32 %v108, %v94
    %v116 = vmul.f32 %v110, %v94
    %v117 = vmul.f32 %v112, %v94
    %v118 = vmul.f32 %v114, %v94
    %v119 = vadd.f32 %v115, 1e-05
    %v120 = vadd.f32 %v116, 1e-05
    %v121 = vadd.f32 %v117, 1e-05
    %v122 = vadd.f32 %v118, 1e-05
    %v123 = vrsqrt.pop %v119
    %v124 = vrsqrt.pop %v120
    %v125 = vrsqrt.pop %v121
    %v126 = vrsqrt.pop %v122
    %v127 = vmul.f32 %v99, %v123
    %v128 = vmul.f32 %v100, %v124
    %v129 = vmul.f32 %v101, %v125
    %v130 = vmul.f32 %v102, %v126
    %v131 = vld [vmem:[%s3] sm:$0x1]
    %v133 = vlaneseq
    %v134 = vshrl.u32 %v133, 7
    %v135 = vsub.s32 0, %v134
    %v136 = vrot.slane %v131, %v135
    %v138 = vmul.f32 %v127, %v136
    %v139 = vmul.f32 %v128, %v136
    %v140 = vmul.f32 %v129, %v136
    %v141 = vmul.f32 %v130, %v136
    %v142 = vld [vmem:[%s4] sm:$0x1]
    %v144 = vlaneseq
    %v145 = vshrl.u32 %v144, 7
    %v146 = vsub.s32 0, %v145
    %v147 = vrot.slane %v142, %v146
    %v149 = vadd.f32 %v138, %v147
    %v150 = vadd.f32 %v139, %v147
    %v151 = vadd.f32 %v140, %v147
    %v152 = vadd.f32 %v141, %v147
    %v153 = vld [vmem:[%s2] sm:$0xff]
    %v154 = vmul.f32 %v153, 11.313708
    %155 = vadd.xlane.f32.xlu0 %v154
    %v156 = vpop.xlane.xlu0 %155
    %v157 = vmul.f32 %v156, %v94
    %v158 = vsub.f32 %v154, %v157
    %v159 = vmul.f32 %v158, %v158
    %160 = vadd.xlane.f32.xlu0 %v159
    %v161 = vpop.xlane.xlu0 %160
    %v162 = vmul.f32 %v161, %v94
    %v163 = vadd.f32 %v162, 1e-05
    %v164 = vrsqrt.pop %v163
    %v165 = vmul.f32 %v158, %v164
    %v166 = vld [vmem:[%s5] sm:$0x1]
    %v168 = vlaneseq
    %v169 = vshrl.u32 %v168, 7
    %v170 = vsub.s32 0, %v169
    %v171 = vrot.slane %v166, %v170
    %v173 = vmul.f32 %v165, %v171
    %v174 = vld [vmem:[%s6] sm:$0x1]
    %v176 = vlaneseq
    %v177 = vshrl.u32 %v176, 7
    %v178 = vsub.s32 0, %v177
    %v179 = vrot.slane %v174, %v178
    %v181 = vadd.f32 %v173, %v179
    %v182 = vpack.c.bf16 %v149, %v181
    %v183 = vpack.c.bf16 %v151, %v150
    %v184 = vpack.c.bf16 %v152, %v152
    %v185 = vld [vmem:[#allocation6] sm:$0xff]
    %v186 = vld [vmem:[#allocation6 + $0x8] sm:$0xf]
    %v187 = vld [vmem:[#allocation6 + $0xc] sm:$0xff]
    %v188 = vld [vmem:[#allocation6 + $0x14] sm:$0xf]
    %v189 = vld [vmem:[#allocation6 + $0x18] sm:$0xff]
    %v190 = vld [vmem:[#allocation6 + $0x20] sm:$0xf]
    %v191 = vld [vmem:[#allocation6 + $0x24] sm:$0xff]
    %v192 = vld [vmem:[#allocation6 + $0x2c] sm:$0xf]
    %v193 = vld [vmem:[#allocation6 + $0x30] sm:$0xff]
    %v194 = vld [vmem:[#allocation6 + $0x38] sm:$0xf]
    %v195 = vld [vmem:[#allocation6 + $0x3c] sm:$0xff]
    %v196 = vld [vmem:[#allocation6 + $0x44] sm:$0xf]
    %v197 = vld [vmem:[#allocation6 + $0x48] sm:$0xff]
    %v198 = vld [vmem:[#allocation6 + $0x50] sm:$0xf]
    %v199 = vld [vmem:[#allocation6 + $0x54] sm:$0xff]
    %v200 = vld [vmem:[#allocation6 + $0x5c] sm:$0xf]
    %v201 = vld [vmem:[#allocation6 + $0x60] sm:$0xff]
    %v202 = vld [vmem:[#allocation6 + $0x68] sm:$0xf]
    %v203 = vld [vmem:[#allocation6 + $0x6c] sm:$0xff]
    %v204 = vld [vmem:[#allocation6 + $0x74] sm:$0xf]
    %v205 = vld [vmem:[#allocation6 + $0x78] sm:$0xff]
    %v206 = vld [vmem:[#allocation6 + $0x80] sm:$0xf]
    %v207 = vld [vmem:[#allocation6 + $0x84] sm:$0xff]
    %v208 = vld [vmem:[#allocation6 + $0x8c] sm:$0xf]
    %v209 = vld [vmem:[#allocation6 + $0x90] sm:$0xff]
    %v210 = vld [vmem:[#allocation6 + $0x98] sm:$0xf]
    %v211 = vld [vmem:[#allocation6 + $0x9c] sm:$0xff]
    %v212 = vld [vmem:[#allocation6 + $0xa4] sm:$0xf]
    %v213 = vld [vmem:[#allocation6 + $0xa8] sm:$0xff]
    %v214 = vld [vmem:[#allocation6 + $0xb0] sm:$0xf]
    %v215 = vld [vmem:[#allocation6 + $0xb4] sm:$0xff]
    %v216 = vld [vmem:[#allocation6 + $0xbc] sm:$0xf]
    %v217 = vld [vmem:[%s8] sm:$0x7]
    %v219 = vlaneseq
    %v220 = vshrl.u32 %v219, 7
    %v221 = vsub.s32 0, %v220
    %v222 = vrot.slane %v217, %v221
    %v223 = vlaneseq
    %v224 = vshrl.u32 %v223, 7
    %v225 = vsub.s32 1, %v224
    %v226 = vrot.slane %v217, %v225
    %v227 = vlaneseq
    %v228 = vshrl.u32 %v227, 7
    %v229 = vsub.s32 2, %v228
    %v230 = vrot.slane %v217, %v229
    %v266 = vunpack.c.l.b16 %v185
    %v267 = vunpack.c.h.b16 %v185
    %v268 = vunpack.c.l.b16 %v186
    %v269 = vunpack.c.l.b16 %v187
    %v270 = vunpack.c.h.b16 %v187
    %v271 = vunpack.c.l.b16 %v188
    %v272 = vunpack.c.l.b16 %v189
    %v273 = vunpack.c.h.b16 %v189
    %v274 = vunpack.c.l.b16 %v190
    %v275 = vunpack.c.l.b16 %v191
    %v276 = vunpack.c.h.b16 %v191
    %v277 = vunpack.c.l.b16 %v192
    %v278 = vunpack.c.l.b16 %v193
    %v279 = vunpack.c.h.b16 %v193
    %v280 = vunpack.c.l.b16 %v194
    %v281 = vunpack.c.l.b16 %v195
    %v282 = vunpack.c.h.b16 %v195
    %v283 = vunpack.c.l.b16 %v196
    %v284 = vunpack.c.l.b16 %v197
    %v285 = vunpack.c.h.b16 %v197
    %v286 = vunpack.c.l.b16 %v198
    %v287 = vunpack.c.l.b16 %v199
    %v288 = vunpack.c.h.b16 %v199
    %v289 = vunpack.c.l.b16 %v200
    %v290 = vunpack.c.l.b16 %v201
    %v291 = vunpack.c.h.b16 %v201
    %v292 = vunpack.c.l.b16 %v202
    %v293 = vunpack.c.l.b16 %v203
    %v294 = vunpack.c.h.b16 %v203
    %v295 = vunpack.c.l.b16 %v204
    %v296 = vunpack.c.l.b16 %v205
    %v297 = vunpack.c.h.b16 %v205
    %v298 = vunpack.c.l.b16 %v206
    %v299 = vunpack.c.l.b16 %v207
    %v300 = vunpack.c.h.b16 %v207
    %v301 = vunpack.c.l.b16 %v208
    %v302 = vunpack.c.l.b16 %v209
    %v303 = vunpack.c.h.b16 %v209
    %v304 = vunpack.c.l.b16 %v210
    %v305 = vunpack.c.l.b16 %v211
    %v306 = vunpack.c.h.b16 %v211
    %v307 = vunpack.c.l.b16 %v212
    %v308 = vunpack.c.l.b16 %v213
    %v309 = vunpack.c.h.b16 %v213
    %v310 = vunpack.c.l.b16 %v214
    %v311 = vunpack.c.l.b16 %v215
    %v312 = vunpack.c.h.b16 %v215
    %v313 = vunpack.c.l.b16 %v216
    %v314 = vpack.c.b16 %v269, %v266
    %v315 = vpack.c.b16 %v270, %v267
    %v316 = vpack.c.b16 %v271, %v268
    %v317 = vpack.c.b16 %v275, %v272
    %v318 = vpack.c.b16 %v276, %v273
    %v319 = vpack.c.b16 %v277, %v274
    %v320 = vpack.c.b16 %v281, %v278
    %v321 = vpack.c.b16 %v282, %v279
    %v322 = vpack.c.b16 %v283, %v280
    %v323 = vpack.c.b16 %v287, %v284
    %v324 = vpack.c.b16 %v288, %v285
    %v325 = vpack.c.b16 %v289, %v286
    %v326 = vpack.c.b16 %v293, %v290
    %v327 = vpack.c.b16 %v294, %v291
    %v328 = vpack.c.b16 %v295, %v292
    %v329 = vpack.c.b16 %v299, %v296
    %v330 = vpack.c.b16 %v300, %v297
    %v331 = vpack.c.b16 %v301, %v298
    %v332 = vpack.c.b16 %v305, %v302
    %v333 = vpack.c.b16 %v306, %v303
    %v334 = vpack.c.b16 %v307, %v304
    %v335 = vpack.c.b16 %v311, %v308
    %v336 = vpack.c.b16 %v312, %v309
    %v337 = vpack.c.b16 %v313, %v310
    %362 = vmatprep.subr.bf16.mxu0 %v336
    %363 = vmatpush1.bf16.msra.mxu0 %v335
    %364 = vmatprep.subr.bf16.mxu0 %v333
    %365 = vmatpush1.bf16.msra.mxu0 %v332
    %366 = vmatprep.subr.bf16.mxu0 %v330
    %367 = vmatpush1.bf16.msra.mxu0 %v329
    %368 = vmatprep.subr.bf16.mxu0 %v327
    %369 = vmatpush1.bf16.msra.mxu0 %v326
    %370 = vmatprep.subr.bf16.mxu0 %v324
    %371 = vmatpush1.bf16.msra.mxu0 %v323
    %372 = vmatprep.subr.bf16.mxu0 %v321
    %373 = vmatpush1.bf16.msra.mxu0 %v320
    %374 = vmatprep.subr.bf16.mxu0 %v318
    %375 = vmatpush1.bf16.msra.mxu0 %v317
    %376 = vmatprep.subr.bf16.mxu0 %v315
    %377 = vmatpush1.bf16.msra.mxu0 %v314
    %378 = vmatprep.subr.bf16.mxu0 0
    %379 = vmatpush2.bf16.msra.mxu0 0
    %380 = vmatprep.subr.bf16.mxu0 0
    %381 = vmatpush2.bf16.msra.mxu0 0
    %382 = vmatprep.subr.bf16.mxu0 0
    %383 = vmatpush2.bf16.msra.mxu0 0
    %384 = vmatprep.subr.bf16.mxu0 0
    %385 = vmatpush2.bf16.msra.mxu0 0
    %386 = vmatprep.subr.bf16.mxu0 0
    %387 = vmatpush2.bf16.msra.mxu0 0
    %388 = vmatprep.subr.bf16.mxu0 0
    %389 = vmatpush2.bf16.msra.mxu0 0
    %390 = vmatprep.subr.bf16.mxu0 0
    %391 = vmatpush2.bf16.msra.mxu0 0
    %392 = vmatprep.subr.bf16.mxu0 0
    %393 = vmatpush2.bf16.msra.mxu0 0
    %394 = vmatprep.mubr.bf16.mxu0 0
    %395 = vmatmul.mubr.bf16.gmra.mxu0 %v182
    %v396 = vpop.f32.mrf.mxu0
    %v397 = vadd.f32 %v222, %v396
    %v398 = vpop.f32.mrf.mxu0
    %v399 = vpop.f32.mrf.mxu0
    %v400 = vpop.f32.mrf.mxu0
    %v401 = vadd.f32 %v226, %v400
    %402 = vmatprep.mubr.bf16.mxu0 0
    %403 = vmatmul.mubr.bf16.gmra.mxu0 %v183
    %v404 = vpop.f32.mrf.mxu0
    %v405 = vpop.f32.mrf.mxu0
    %v406 = vadd.f32 %v226, %v405
    %v407 = vpop.f32.mrf.mxu0
    %v408 = vpop.f32.mrf.mxu0
    %v409 = vadd.f32 %v226, %v408
    %410 = vmatprep.mubr.bf16.mxu0 0
    %411 = vmatmul.mubr.bf16.gmra.mxu0 %v184
    %v412 = vpop.f32.mrf.mxu0
    %v413 = vpop.f32.mrf.mxu0
    %v414 = vadd.f32 %v226, %v413
    %v415 = vpop.f32.mrf.mxu0
    %v416 = vpop.f32.mrf.mxu0
    %417 = vdwg.mxu0
    %418 = vmatprep.subr.bf16.mxu0 0
    %419 = vmatpush1.bf16.msra.mxu0 %v337
    %420 = vmatprep.subr.bf16.mxu0 0
    %421 = vmatpush1.bf16.msra.mxu0 %v334
    %422 = vmatprep.subr.bf16.mxu0 0
    %423 = vmatpush1.bf16.msra.mxu0 %v331
    %424 = vmatprep.subr.bf16.mxu0 0
    %425 = vmatpush1.bf16.msra.mxu0 %v328
    %426 = vmatprep.subr.bf16.mxu0 0
    %427 = vmatpush1.bf16.msra.mxu0 %v325
    %428 = vmatprep.subr.bf16.mxu0 0
    %429 = vmatpush1.bf16.msra.mxu0 %v322
    %430 = vmatprep.subr.bf16.mxu0 0
    %431 = vmatpush1.bf16.msra.mxu0 %v319
    %432 = vmatprep.subr.bf16.mxu0 0
    %433 = vmatpush1.bf16.msra.mxu0 %v316
    %434 = vmatprep.subr.bf16.mxu0 0
    %435 = vmatpush2.bf16.msra.mxu0 0
    %436 = vmatprep.subr.bf16.mxu0 0
    %437 = vmatpush2.bf16.msra.mxu0 0
    %438 = vmatprep.subr.bf16.mxu0 0
    %439 = vmatpush2.bf16.msra.mxu0 0
    %440 = vmatprep.subr.bf16.mxu0 0
    %441 = vmatpush2.bf16.msra.mxu0 0
    %442 = vmatprep.subr.bf16.mxu0 0
    %443 = vmatpush2.bf16.msra.mxu0 0
    %444 = vmatprep.subr.bf16.mxu0 0
    %445 = vmatpush2.bf16.msra.mxu0 0
    %446 = vmatprep.subr.bf16.mxu0 0
    %447 = vmatpush2.bf16.msra.mxu0 0
    %448 = vmatprep.subr.bf16.mxu0 0
    %449 = vmatpush2.bf16.msra.mxu0 0
    %450 = vmatprep.mubr.bf16.mxu0 0
    %451 = vmatmul.mubr.bf16.gmra.mxu0 %v182
    %v452 = vpop.f32.mrf.mxu0
    %v453 = vpop.f32.mrf.mxu0
    %v454 = vpop.f32.mrf.mxu0
    %v455 = vadd.f32 %v230, %v454
    %v456 = vpop.f32.mrf.mxu0
    %457 = vmatprep.mubr.bf16.mxu0 0
    %458 = vmatmul.mubr.bf16.gmra.mxu0 %v183
    %v459 = vpop.f32.mrf.mxu0
    %v460 = vadd.f32 %v230, %v459
    %v461 = vpop.f32.mrf.mxu0
    %v462 = vpop.f32.mrf.mxu0
    %v463 = vadd.f32 %v230, %v462
    %v464 = vpop.f32.mrf.mxu0
    %465 = vmatprep.mubr.bf16.mxu0 0
    %466 = vmatmul.mubr.bf16.gmra.mxu0 %v184
    %v467 = vpop.f32.mrf.mxu0
    %v468 = vadd.f32 %v230, %v467
    %v469 = vpop.f32.mrf.mxu0
    %v470 = vpop.f32.mrf.mxu0
    %v471 = vpop.f32.mrf.mxu0
    %472 = vdwg.mxu0
    %v473 = vmul.f32 %v397, 0.088388346
    %v474 = vpack.c.bf16 %v473, %v473
    %v475 = vpack.c.bf16 %v406, %v401
    %476 = vmatprep.subr.bf16.mxu0 0
    %477 = vmatpush1.bf16.xpose.msra.mxu0 0
    %478 = vmatprep.subr.bf16.mxu0 0
    %479 = vmatpush1.bf16.xpose.msra.mxu0 0
    %480 = vmatprep.subr.bf16.mxu0 0
    %481 = vmatpush1.bf16.xpose.msra.mxu0 0
    %482 = vmatprep.subr.bf16.mxu0 0
    %483 = vmatpush1.bf16.xpose.msra.mxu0 0
    %484 = vmatprep.subr.bf16.mxu0 0
    %485 = vmatpush1.bf16.xpose.msra.mxu0 0
    %486 = vmatprep.subr.bf16.mxu0 0
    %487 = vmatpush1.bf16.xpose.msra.mxu0 0
    %488 = vmatprep.subr.bf16.mxu0 0
    %489 = vmatpush1.bf16.xpose.msra.mxu0 0
    %490 = vmatprep.subr.bf16.mxu0 0
    %491 = vmatpush1.bf16.xpose.msra.mxu0 %v475
    %492 = vmatprep.subr.bf16.mxu0 0
    %493 = vmatpush2.bf16.xpose.msra.mxu0 0
    %494 = vmatprep.subr.bf16.mxu0 0
    %495 = vmatpush2.bf16.xpose.msra.mxu0 0
    %496 = vmatprep.subr.bf16.mxu0 0
    %497 = vmatpush2.bf16.xpose.msra.mxu0 0
    %498 = vmatprep.subr.bf16.mxu0 0
    %499 = vmatpush2.bf16.xpose.msra.mxu0 0
    %500 = vmatprep.subr.bf16.mxu0 0
    %501 = vmatpush2.bf16.xpose.msra.mxu0 0
    %502 = vmatprep.subr.bf16.mxu0 0
    %503 = vmatpush2.bf16.xpose.msra.mxu0 0
    %504 = vmatprep.subr.bf16.mxu0 0
    %505 = vmatpush2.bf16.xpose.msra.mxu0 0
    %506 = vmatprep.subr.bf16.mxu0 0
    %507 = vmatpush2.bf16.xpose.msra.mxu0 0
    %508 = vmatprep.mubr.bf16.mxu0 0
    %509 = vmatmul.mubr.bf16.gmra.mxu0 %v474
    %v510 = vpop.f32.mrf.mxu0
    %v511 = vadd.f32 0.0, %v510
    %v512 = vpop.f32.mrf.mxu0
    %v513 = vpop.f32.mrf.mxu0
    %v514 = vpop.f32.mrf.mxu0
    %515 = vdwg.mxu0
    %vm516 = vcmask 130048
    %v517 = vsel %vm516, %v511, -inf
    %518 = vmax.xlane.f32.xlu0 %v517
    %v519 = vpop.xlane.xlu0 %518
    %v520 = vsub.f32 %v511, %v519
    %v521 = vmul.f32 %v520, 1.442695
    %v522 = vpow.pop %v521
    %v523 = vsel %vm516, %v522, 0.0
    %524 = vadd.xlane.f32.xlu0 %v523
    %v525 = vpop.xlane.xlu0 %524
    %v526 = vrcp.pop %v525
    %v527 = vmul.f32 %v522, %v526
    %528 = vst.msk [vmem:[#allocation8] sm:$0xff] %vm516, %v527
    %v529 = vpack.c.bf16 %v527, %v527
    %v530 = vpack.c.bf16 %v460, %v455
    %v532 = vsel %vm516, %v529, 0
    %534 = vmatprep.subr.bf16.mxu0 0
    %535 = vmatpush1.bf16.msra.mxu0 0
    %536 = vmatprep.subr.bf16.mxu0 0
    %537 = vmatpush1.bf16.msra.mxu0 0
    %538 = vmatprep.subr.bf16.mxu0 0
    %539 = vmatpush1.bf16.msra.mxu0 0
    %540 = vmatprep.subr.bf16.mxu0 0
    %541 = vmatpush1.bf16.msra.mxu0 0
    %542 = vmatprep.subr.bf16.mxu0 0
    %543 = vmatpush1.bf16.msra.mxu0 0
    %544 = vmatprep.subr.bf16.mxu0 0
    %545 = vmatpush1.bf16.msra.mxu0 0
    %546 = vmatprep.subr.bf16.mxu0 0
    %547 = vmatpush1.bf16.msra.mxu0 0
    %548 = vmatprep.subr.bf16.mxu0 0
    %549 = vmatpush1.bf16.msra.mxu0 %v530
    %550 = vmatprep.subr.bf16.mxu0 0
    %551 = vmatpush2.bf16.msra.mxu0 0
    %552 = vmatprep.subr.bf16.mxu0 0
    %553 = vmatpush2.bf16.msra.mxu0 0
    %554 = vmatprep.subr.bf16.mxu0 0
    %555 = vmatpush2.bf16.msra.mxu0 0
    %556 = vmatprep.subr.bf16.mxu0 0
    %557 = vmatpush2.bf16.msra.mxu0 0
    %558 = vmatprep.subr.bf16.mxu0 0
    %559 = vmatpush2.bf16.msra.mxu0 0
    %560 = vmatprep.subr.bf16.mxu0 0
    %561 = vmatpush2.bf16.msra.mxu0 0
    %562 = vmatprep.subr.bf16.mxu0 0
    %563 = vmatpush2.bf16.msra.mxu0 0
    %564 = vmatprep.subr.bf16.mxu0 0
    %565 = vmatpush2.bf16.msra.mxu0 0
    %566 = vmatprep.mubr.bf16.mxu0 0
    %567 = vmatmul.mubr.bf16.gmra.mxu0 %v532
    %v568 = vpop.f32.mrf.mxu0
    %v569 = vadd.f32 0.0, %v568
    %v570 = vpop.f32.mrf.mxu0
    %v571 = vpop.f32.mrf.mxu0
    %v572 = vpop.f32.mrf.mxu0
    %573 = vdwg.mxu0
    %v574 = vld [vmem:[%s9] sm:$0x1]
    %v576 = vlaneseq
    %v577 = vshrl.u32 %v576, 7
    %v578 = vsub.s32 0, %v577
    %v579 = vrot.slane %v574, %v578
    %v581 = vmul.f32 %v569, %v579
    %582 = vadd.xlane.f32.xlu0 %v581
    %v583 = vpop.xlane.xlu0 %582
    %v584 = vld [vmem:[#allocation2] sm:$0x1]
    %v586 = vlaneseq
    %v587 = vshrl.u32 %v586, 7
    %v588 = vsub.s32 0, %v587
    %v589 = vrot.slane %v584, %v588
    %v591 = vadd.f32 %v583, %v589
    %vm592 = vcmask 7168
    %593 = vst.msk [vmem:[%s11] sm:$0xff] %vm592, %v591
    %v594 = vpack.c.bf16 %v414, %v409
    %595 = vmatprep.subr.bf16.mxu0 0
    %596 = vmatpush1.bf16.xpose.msra.mxu0 0
    %597 = vmatprep.subr.bf16.mxu0 0
    %598 = vmatpush1.bf16.xpose.msra.mxu0 0
    %599 = vmatprep.subr.bf16.mxu0 0
    %600 = vmatpush1.bf16.xpose.msra.mxu0 0
    %601 = vmatprep.subr.bf16.mxu0 0
    %602 = vmatpush1.bf16.xpose.msra.mxu0 0
    %603 = vmatprep.subr.bf16.mxu0 0
    %604 = vmatpush1.bf16.xpose.msra.mxu0 0
    %605 = vmatprep.subr.bf16.mxu0 0
    %606 = vmatpush1.bf16.xpose.msra.mxu0 0
    %607 = vmatprep.subr.bf16.mxu0 0
    %608 = vmatpush1.bf16.xpose.msra.mxu0 0
    %609 = vmatprep.subr.bf16.mxu0 0
    %610 = vmatpush1.bf16.xpose.msra.mxu0 %v594
    %611 = vmatprep.subr.bf16.mxu0 0
    %612 = vmatpush2.bf16.xpose.msra.mxu0 0
    %613 = vmatprep.subr.bf16.mxu0 0
    %614 = vmatpush2.bf16.xpose.msra.mxu0 0
    %615 = vmatprep.subr.bf16.mxu0 0
    %616 = vmatpush2.bf16.xpose.msra.mxu0 0
    %617 = vmatprep.subr.bf16.mxu0 0
    %618 = vmatpush2.bf16.xpose.msra.mxu0 0
    %619 = vmatprep.subr.bf16.mxu0 0
    %620 = vmatpush2.bf16.xpose.msra.mxu0 0
    %621 = vmatprep.subr.bf16.mxu0 0
    %622 = vmatpush2.bf16.xpose.msra.mxu0 0
    %623 = vmatprep.subr.bf16.mxu0 0
    %624 = vmatpush2.bf16.xpose.msra.mxu0 0
    %625 = vmatprep.subr.bf16.mxu0 0
    %626 = vmatpush2.bf16.xpose.msra.mxu0 0
    %627 = vmatprep.mubr.bf16.mxu0 0
    %628 = vmatmul.mubr.bf16.gmra.mxu0 %v474
    %v629 = vpop.f32.mrf.mxu0
    %v630 = vadd.f32 0.0, %v629
    %v631 = vpop.f32.mrf.mxu0
    %v632 = vpop.f32.mrf.mxu0
    %v633 = vpop.f32.mrf.mxu0
    %634 = vdwg.mxu0
    %v635 = vsel %vm516, %v630, -inf
    %636 = vmax.xlane.f32.xlu0 %v635
    %v637 = vpop.xlane.xlu0 %636
    %v638 = vsub.f32 %v630, %v637
    %v639 = vmul.f32 %v638, 1.442695
    %v640 = vpow.pop %v639
    %v641 = vsel %vm516, %v640, 0.0
    %642 = vadd.xlane.f32.xlu0 %v641
    %v643 = vpop.xlane.xlu0 %642
    %v644 = vrcp.pop %v643
    %v645 = vmul.f32 %v640, %v644
    %s646 = scalar_lea.vmem [#allocation8], 8
    %647 = vst.msk [vmem:[%s646] sm:$0xff] %vm516, %v645
    %v648 = vpack.c.bf16 %v645, %v645
    %v649 = vpack.c.bf16 %v468, %v463
    %v651 = vsel %vm516, %v648, 0
    %653 = vmatprep.subr.bf16.mxu0 0
    %654 = vmatpush1.bf16.msra.mxu0 0
    %655 = vmatprep.subr.bf16.mxu0 0
    %656 = vmatpush1.bf16.msra.mxu0 0
    %657 = vmatprep.subr.bf16.mxu0 0
    %658 = vmatpush1.bf16.msra.mxu0 0
    %659 = vmatprep.subr.bf16.mxu0 0
    %660 = vmatpush1.bf16.msra.mxu0 0
    %661 = vmatprep.subr.bf16.mxu0 0
    %662 = vmatpush1.bf16.msra.mxu0 0
    %663 = vmatprep.subr.bf16.mxu0 0
    %664 = vmatpush1.bf16.msra.mxu0 0
    %665 = vmatprep.subr.bf16.mxu0 0
    %666 = vmatpush1.bf16.msra.mxu0 0
    %667 = vmatprep.subr.bf16.mxu0 0
    %668 = vmatpush1.bf16.msra.mxu0 %v649
    %669 = vmatprep.subr.bf16.mxu0 0
    %670 = vmatpush2.bf16.msra.mxu0 0
    %671 = vmatprep.subr.bf16.mxu0 0
    %672 = vmatpush2.bf16.msra.mxu0 0
    %673 = vmatprep.subr.bf16.mxu0 0
    %674 = vmatpush2.bf16.msra.mxu0 0
    %675 = vmatprep.subr.bf16.mxu0 0
    %676 = vmatpush2.bf16.msra.mxu0 0
    %677 = vmatprep.subr.bf16.mxu0 0
    %678 = vmatpush2.bf16.msra.mxu0 0
    %679 = vmatprep.subr.bf16.mxu0 0
    %680 = vmatpush2.bf16.msra.mxu0 0
    %681 = vmatprep.subr.bf16.mxu0 0
    %682 = vmatpush2.bf16.msra.mxu0 0
    %683 = vmatprep.subr.bf16.mxu0 0
    %684 = vmatpush2.bf16.msra.mxu0 0
    %685 = vmatprep.mubr.bf16.mxu0 0
    %686 = vmatmul.mubr.bf16.gmra.mxu0 %v651
    %v687 = vpop.f32.mrf.mxu0
    %v688 = vadd.f32 0.0, %v687
    %v689 = vpop.f32.mrf.mxu0
    %v690 = vpop.f32.mrf.mxu0
    %v691 = vpop.f32.mrf.mxu0
    %692 = vdwg.mxu0
    %v693 = vld [vmem:[%s9] sm:$0x1]
    %v695 = vlaneseq
    %v696 = vshrl.u32 %v695, 7
    %v697 = vsub.s32 0, %v696
    %v698 = vrot.slane %v693, %v697
    %v700 = vmul.f32 %v688, %v698
    %701 = vadd.xlane.f32.xlu0 %v700
    %v702 = vpop.xlane.xlu0 %701
    %v703 = vld [vmem:[#allocation2] sm:$0x1]
    %v705 = vlaneseq
    %v706 = vshrl.u32 %v705, 7
    %v707 = vsub.s32 0, %v706
    %v708 = vrot.slane %v703, %v707
    %v710 = vadd.f32 %v702, %v708
    %s711 = scalar_lea.vmem %s11, 8
    %712 = vst.msk [vmem:[%s711] sm:$0xff] %vm592, %v710
    // Predicated region
    $region54: #{attention_pooling.1} parent=1 // pred_check
      _
    $region55: #{attention_pooling.1} parent=1 // pred_check_branch
      %714 = sbr.rel (0) target = $region57
    $region56: #{attention_pooling.1} parent=1 // pred_region
      _
    $region57: #{attention_pooling.1} parent=1 // pred_fallthru
      _
    // Predicated region
    $region58: #{attention_pooling.1} parent=1 // pred_check
      _
    $region59: #{attention_pooling.1} parent=1 // pred_check_branch
      %716 = sbr.rel (0) target = $region61
    $region60: #{attention_pooling.1} parent=1 // pred_region
      %s718 = ssub.s32 256, 256
      %719 = vsyncadd [#allocation5], %s718
      %s720 = sshll.u32 [#allocation8], 4
      %s721 = int_to_ptr.vmem [resolvable:$true] %s720
      %726 = dma.vmem_to_hbm [thread:$0]  %s721, 256, %s12, [#allocation5], 128, 128, 8
    $region61: #{attention_pooling.1} parent=1 // pred_fallthru
      _
    // Predicated region
    $region62: #{attention_pooling.1} parent=1 // pred_check
      _
    $region63: #{attention_pooling.1} parent=1 // pred_check_branch
      %728 = sbr.rel (0) target = $region65
    $region64: #{attention_pooling.1} parent=1 // pred_region
      _
    $region65: #{attention_pooling.1} parent=1 // pred_fallthru
      _
    // Predicated region
    $region66: #{attention_pooling.1} parent=1 // pred_check
      _
    $region67: #{attention_pooling.1} parent=1 // pred_check_branch
      %730 = sbr.rel (0) target = $region69
    $region68: #{attention_pooling.1} parent=1 // pred_region
      %731 = dma.done [#allocation5], 256
    $region69: #{attention_pooling.1} parent=1 // pred_fallthru
      _
    %732 = vsyncpa [#allocation4], 1
    %733 = vsyncpa [#allocation7], 1
    %734 = vsyncpa [#allocation5], 1

</llo_original>
